<compile_context>
chip_gen: v6e
topology: v6e:2x2x1
jax: 0.10.0
libtpu: 0.0.40
codegen_flags: <defaults>
</compile_context>

<pallas_src>
import functools
import math

import jax
import jax.numpy as jnp
from jax.experimental import pallas as pl
from jax.experimental.pallas import tpu as pltpu


# -----------------------------------------------------------------------------
# Small helpers
# -----------------------------------------------------------------------------
def _round_up(n, m):
    return ((n + m - 1) // m) * m


def _pad2(x, rows, cols):
    pr, pc = rows - x.shape[0], cols - x.shape[1]
    if pr or pc:
        x = jnp.pad(x, ((0, pr), (0, pc)))
    return x


# -----------------------------------------------------------------------------
# Pallas kernels
# -----------------------------------------------------------------------------
def _matmul_kernel(*refs, has_bias, activation):
    """Tiled matmul, grid (M_t, N_t, K_t); bf16 operands, f32 accumulate.

    Epilogue (on last K step): optional bias add, optional ReLU.
    """
    if has_bias:
        x_ref, w_ref, b_ref, o_ref, acc_ref = refs
    else:
        x_ref, w_ref, o_ref, acc_ref = refs
        b_ref = None

    k = pl.program_id(2)

    @pl.when(k == 0)
    def _():
        acc_ref[...] = jnp.zeros_like(acc_ref)

    acc_ref[...] += jnp.dot(
        x_ref[...].astype(jnp.bfloat16),
        w_ref[...].astype(jnp.bfloat16),
        preferred_element_type=jnp.float32,
    )

    @pl.when(k == pl.num_programs(2) - 1)
    def _():
        y = acc_ref[...]
        if b_ref is not None:
            y = y + b_ref[...]
        if activation == "relu":
            y = jnp.maximum(y, 0.0)
        o_ref[...] = y


def _matmul_res_ln_kernel(x_ref, w_ref, b_ref, res_ref, g_ref, beta_ref,
                          o_ref, acc_ref, *, eps):
    """Tiled matmul, grid (M_t, K_t), full-D output; fused bias + residual + LayerNorm."""
    k = pl.program_id(1)

    @pl.when(k == 0)
    def _():
        acc_ref[...] = jnp.zeros_like(acc_ref)

    acc_ref[...] += jnp.dot(
        x_ref[...].astype(jnp.bfloat16),
        w_ref[...].astype(jnp.bfloat16),
        preferred_element_type=jnp.float32,
    )

    @pl.when(k == pl.num_programs(1) - 1)
    def _():
        y = acc_ref[...] + b_ref[...] + res_ref[...]
        mean = jnp.mean(y, axis=-1, keepdims=True)
        var = jnp.mean((y - mean) ** 2, axis=-1, keepdims=True)
        inv = jax.lax.rsqrt(var + eps)
        o_ref[...] = (y - mean) * inv * g_ref[...] + beta_ref[...]


def _layernorm_kernel(x_ref, g_ref, b_ref, o_ref, *, eps):
    x = x_ref[...]
    mean = jnp.mean(x, axis=-1, keepdims=True)
    var = jnp.mean((x - mean) ** 2, axis=-1, keepdims=True)
    inv = jax.lax.rsqrt(var + eps)
    o_ref[...] = (x - mean) * inv * g_ref[...] + b_ref[...]


def _attention_kernel(q_ref, k_ref, v_ref, m_ref, o_ref, *,
                      n_head, d_k, d_v, scale, causal):
    """Fused multi-head attention for one batch element.

    q: (Lq, H*d_k), k: (Lk, H*d_k), v: (Lk, H*d_v), mask bias: (1, Lk) f32 additive.
    Output written as one lane-dense (Lq, H*d_v) block.
    """
    q = q_ref[0]
    k = k_ref[0]
    v = v_ref[0]
    key_bias = m_ref[0]              # (1, Lk), broadcasts over query rows

    Lq = q.shape[0]
    Lk = k.shape[0]

    if causal:
        row = jax.lax.broadcasted_iota(jnp.int32, (Lq, Lk), 0)
        col = jax.lax.broadcasted_iota(jnp.int32, (Lq, Lk), 1)
        causal_ok = col <= row

    outs = []
    for h in range(n_head):
        qh = q[:, h * d_k:(h + 1) * d_k].astype(jnp.bfloat16)
        kh = k[:, h * d_k:(h + 1) * d_k].astype(jnp.bfloat16)
        vh = v[:, h * d_v:(h + 1) * d_v].astype(jnp.bfloat16)

        s = jax.lax.dot_general(
            qh, kh, (((1,), (1,)), ((), ())),
            preferred_element_type=jnp.float32,
        ) * scale + key_bias
        if causal:
            s = jnp.where(causal_ok, s, -1e9)

        s = s - jnp.max(s, axis=-1, keepdims=True)
        p = jnp.exp(s)
        p = p * pl.reciprocal(jnp.sum(p, axis=-1, keepdims=True), approx=True)

        outs.append(jnp.dot(p.astype(jnp.bfloat16), vh,
                            preferred_element_type=jnp.float32))

    o_ref[0] = jnp.concatenate(outs, axis=-1)


# -----------------------------------------------------------------------------
# Pallas wrappers
# -----------------------------------------------------------------------------
def linear(x2d, w, b=None, activation=None):
    """Tiled x2d @ w (+ b) (+ relu). x2d: (M, K), w: (K, N) -> (M, N), all f32."""
    M, K = x2d.shape
    N = w.shape[1]
    tm = min(256, _round_up(M, 8))
    tn = min(256, _round_up(N, 128))
    tk = min(512, _round_up(K, 128))
    Mp, Np, Kp = _round_up(M, tm), _round_up(N, tn), _round_up(K, tk)

    xp = _pad2(x2d, Mp, Kp)
    wp = _pad2(w, Kp, Np)

    has_bias = b is not None
    args = [xp, wp]
    in_specs = [
        pl.BlockSpec((tm, tk), lambda i, j, k: (i, k)),
        pl.BlockSpec((tk, tn), lambda i, j, k: (k, j)),
    ]
    if has_bias:
        bp = jnp.pad(b, (0, Np - N)).reshape(1, Np)
        args.append(bp)
        in_specs.append(pl.BlockSpec((1, tn), lambda i, j, k: (0, j)))

    kernel = functools.partial(_matmul_kernel, has_bias=has_bias,
                               activation=activation)
    out = pl.pallas_call(
        kernel,
        grid=(Mp // tm, Np // tn, Kp // tk),
        in_specs=in_specs,
        out_specs=pl.BlockSpec((tm, tn), lambda i, j, k: (i, j)),
        out_shape=jax.ShapeDtypeStruct((Mp, Np), jnp.float32),
        scratch_shapes=[pltpu.VMEM((tm, tn), jnp.float32)],
        compiler_params=pltpu.CompilerParams(
            dimension_semantics=("parallel", "parallel", "arbitrary")),
    )(*args)
    return out[:M, :N]


def linear_res_ln(x2d, w, b, res2d, gamma, beta, eps=1e-6):
    """(x2d @ w + b + res2d) -> LayerNorm, fused in one tiled kernel."""
    M, K = x2d.shape
    D = w.shape[1]
    tm = min(256, _round_up(M, 8))
    tk = min(512, _round_up(K, 128))
    Mp, Kp = _round_up(M, tm), _round_up(K, tk)

    xp = _pad2(x2d, Mp, Kp)
    wp = _pad2(w, Kp, D)
    resp = _pad2(res2d, Mp, D)

    out = pl.pallas_call(
        functools.partial(_matmul_res_ln_kernel, eps=eps),
        grid=(Mp // tm, Kp // tk),
        in_specs=[
            pl.BlockSpec((tm, tk), lambda i, k: (i, k)),
            pl.BlockSpec((tk, D), lambda i, k: (k, 0)),
            pl.BlockSpec((1, D), lambda i, k: (0, 0)),
            pl.BlockSpec((tm, D), lambda i, k: (i, 0)),
            pl.BlockSpec((1, D), lambda i, k: (0, 0)),
            pl.BlockSpec((1, D), lambda i, k: (0, 0)),
        ],
        out_specs=pl.BlockSpec((tm, D), lambda i, k: (i, 0)),
        out_shape=jax.ShapeDtypeStruct((Mp, D), jnp.float32),
        scratch_shapes=[pltpu.VMEM((tm, D), jnp.float32)],
        compiler_params=pltpu.CompilerParams(
            dimension_semantics=("parallel", "arbitrary")),
    )(xp, wp, b.reshape(1, D), resp, gamma.reshape(1, D), beta.reshape(1, D))
    return out[:M]


def layer_norm(x2d, gamma, beta, eps=1e-6):
    M, D = x2d.shape
    tm = min(256, _round_up(M, 8))
    Mp = _round_up(M, tm)
    xp = _pad2(x2d, Mp, D)
    out = pl.pallas_call(
        functools.partial(_layernorm_kernel, eps=eps),
        grid=(Mp // tm,),
        in_specs=[
            pl.BlockSpec((tm, D), lambda i: (i, 0)),
            pl.BlockSpec((1, D), lambda i: (0, 0)),
            pl.BlockSpec((1, D), lambda i: (0, 0)),
        ],
        out_specs=pl.BlockSpec((tm, D), lambda i: (i, 0)),
        out_shape=jax.ShapeDtypeStruct((Mp, D), jnp.float32),
        compiler_params=pltpu.CompilerParams(dimension_semantics=("parallel",)),
    )(xp, gamma.reshape(1, D), beta.reshape(1, D))
    return out[:M]


def sdp_attention(q, k, v, key_bias, n_head, d_k, d_v, causal):
    """q: (B, Lq, H*d_k), k: (B, Lk, H*d_k), v: (B, Lk, H*d_v),
    key_bias: (B, 1, Lk) f32 additive (0 / -1e9).  Returns (B, Lq, H*d_v)."""
    B, Lq, _ = q.shape
    Lk = k.shape[1]
    kernel = functools.partial(
        _attention_kernel, n_head=n_head, d_k=d_k, d_v=d_v,
        scale=1.0 / math.sqrt(d_k), causal=causal)
    return pl.pallas_call(
        kernel,
        grid=(B,),
        in_specs=[
            pl.BlockSpec((1, Lq, n_head * d_k), lambda b: (b, 0, 0)),
            pl.BlockSpec((1, Lk, n_head * d_k), lambda b: (b, 0, 0)),
            pl.BlockSpec((1, Lk, n_head * d_v), lambda b: (b, 0, 0)),
            pl.BlockSpec((1, 1, Lk), lambda b: (b, 0, 0)),
        ],
        out_specs=pl.BlockSpec((1, Lq, n_head * d_v), lambda b: (b, 0, 0)),
        out_shape=jax.ShapeDtypeStruct((B, Lq, n_head * d_v), jnp.float32),
        compiler_params=pltpu.CompilerParams(dimension_semantics=("parallel",)),
    )(q, k, v, key_bias)


# -----------------------------------------------------------------------------
# Transformer blocks (glue + Pallas calls)
# -----------------------------------------------------------------------------
def multi_head_attention(p, x_q, x_kv, key_bias, n_head, d_k, d_v, causal=False):
    """x_kv=None -> self-attention (fused QKV projection)."""
    B, Lq, D = x_q.shape
    Hdk, Hdv = n_head * d_k, n_head * d_v

    if x_kv is None:                                   # self-attention: fused QKV
        qkv = linear(x_q.reshape(B * Lq, D), p["w_qkv"], p["b_qkv"])
        q = qkv[:, :Hdk]
        kk = qkv[:, Hdk:2 * Hdk]
        vv = qkv[:, 2 * Hdk:2 * Hdk + Hdv]
        Lk = Lq
    else:                                              # cross-attention: fused KV
        Lk = x_kv.shape[1]
        q = linear(x_q.reshape(B * Lq, D), p["wq"], p["bq"])
        kv = linear(x_kv.reshape(B * Lk, D), p["w_kv"], p["b_kv"])
        kk = kv[:, :Hdk]
        vv = kv[:, Hdk:Hdk + Hdv]

    q = q.reshape(B, Lq, Hdk)
    kk = kk.reshape(B, Lk, Hdk)
    vv = vv.reshape(B, Lk, Hdv)

    o = sdp_attention(q, kk, vv, key_bias, n_head, d_k, d_v, causal)
    # output projection with fused residual add + LayerNorm epilogue
    out = linear_res_ln(o.reshape(B * Lq, Hdv), p["wo"], p["bo"],
                        x_q.reshape(B * Lq, D), p["ln_g"], p["ln_b"])
    return out.reshape(B, Lq, D)


def feed_forward(p, x):
    B, L, D = x.shape
    h = linear(x.reshape(B * L, D), p["w1"], p["b1"], activation="relu")
    out = linear_res_ln(h, p["w2"], p["b2"],
                        x.reshape(B * L, D), p["ln_g"], p["ln_b"])
    return out.reshape(B, L, D)


def positional_encoding_table(max_len, d):
    pos = jnp.arange(max_len, dtype=jnp.float32)[:, None]
    div = jnp.exp(jnp.arange(0, d, 2, dtype=jnp.float32) * (-math.log(10000.0) / d))
    pe = jnp.zeros((max_len, d), jnp.float32)
    pe = pe.at[:, 0::2].set(jnp.sin(pos * div))
    pe = pe.at[:, 1::2].set(jnp.cos(pos * div))
    return pe


def encoder_forward(params, cfg, src_seq, src_key_bias):
    B, L = src_seq.shape
    D = cfg["d_model"]
    x = params["emb"][src_seq]                       # embedding gather (glue)
    x = x + params["pe"][None, :L, :]                # positional encoding
    # dropout = identity (eval)
    x = layer_norm(x.reshape(B * L, D), params["ln_g"], params["ln_b"]).reshape(B, L, D)
    for lp in params["layers"]:
        x = multi_head_attention(lp["self_attn"], x, None, src_key_bias,
                                 cfg["n_head"], cfg["d_k"], cfg["d_v"], causal=False)
        x = feed_forward(lp["ffn"], x)
    return x


def decoder_forward(params, cfg, trg_seq, trg_key_bias, enc_o, src_key_bias):
    B, L = trg_seq.shape
    D = cfg["d_model"]
    x = params["emb"][trg_seq]
    x = x + params["pe"][None, :L, :]
    x = layer_norm(x.reshape(B * L, D), params["ln_g"], params["ln_b"]).reshape(B, L, D)
    for lp in params["layers"]:
        x = multi_head_attention(lp["self_attn"], x, None, trg_key_bias,
                                 cfg["n_head"], cfg["d_k"], cfg["d_v"], causal=True)
        x = multi_head_attention(lp["cross_attn"], x, enc_o, src_key_bias,
                                 cfg["n_head"], cfg["d_k"], cfg["d_v"], causal=False)
        x = feed_forward(lp["ffn"], x)
    return x


def transformer_forward(params, cfg, src_seq, trg_seq):
    B, Ls = src_seq.shape
    _, Lt = trg_seq.shape
    # additive key-padding biases (0 = keep, -1e9 = masked); causal handled in-kernel
    src_key_bias = jnp.where((src_seq != cfg["src_pad"])[:, None, :],
                             0.0, -1e9).astype(jnp.float32)        # (B, 1, Ls)
    trg_key_bias = jnp.where((trg_seq != cfg["trg_pad"])[:, None, :],
                             0.0, -1e9).astype(jnp.float32)        # (B, 1, Lt)

    enc_o = encoder_forward(params["encoder"], cfg, src_seq, src_key_bias)
    dec_o = decoder_forward(params["decoder"], cfg, trg_seq, trg_key_bias,
                            enc_o, src_key_bias)

    D = cfg["d_model"]
    logits = linear(dec_o.reshape(B * Lt, D), params["trg_proj_w"])  # no bias
    return logits                                                    # (B*Lt, vocab)


# -----------------------------------------------------------------------------
# Deterministic parameter initialization (xavier-uniform for matrices)
# -----------------------------------------------------------------------------
def xavier(key, shape):
    fan_in, fan_out = shape
    limit = math.sqrt(6.0 / (fan_in + fan_out))
    return jax.random.uniform(key, shape, jnp.float32, -limit, limit)


def init_attn(key, d_model, n_head, d_k, d_v):
    ks = jax.random.split(key, 4)
    wq = xavier(ks[0], (d_model, n_head * d_k))
    wk = xavier(ks[1], (d_model, n_head * d_k))
    wv = xavier(ks[2], (d_model, n_head * d_v))
    wo = xavier(ks[3], (n_head * d_v, d_model))
    bq = jnp.zeros((n_head * d_k,), jnp.float32)
    bk = jnp.zeros((n_head * d_k,), jnp.float32)
    bv = jnp.zeros((n_head * d_v,), jnp.float32)
    return {
        "wq": wq, "bq": bq,
        "w_qkv": jnp.concatenate([wq, wk, wv], axis=1),
        "b_qkv": jnp.concatenate([bq, bk, bv]),
        "w_kv": jnp.concatenate([wk, wv], axis=1),
        "b_kv": jnp.concatenate([bk, bv]),
        "wo": wo,
        "bo": jnp.zeros((d_model,), jnp.float32),
        "ln_g": jnp.ones((d_model,), jnp.float32),
        "ln_b": jnp.zeros((d_model,), jnp.float32),
    }


def init_ffn(key, d_model, d_ffn):
    k1, k2 = jax.random.split(key)
    return {
        "w1": xavier(k1, (d_model, d_ffn)),
        "b1": jnp.zeros((d_ffn,), jnp.float32),
        "w2": xavier(k2, (d_ffn, d_model)),
        "b2": jnp.zeros((d_model,), jnp.float32),
        "ln_g": jnp.ones((d_model,), jnp.float32),
        "ln_b": jnp.zeros((d_model,), jnp.float32),
    }


def init_stack(key, cfg, vocab, pad_idx, is_decoder):
    d = cfg["d_model"]
    k_emb, k_layers = jax.random.split(key)
    emb = xavier(k_emb, (vocab, d))
    emb = emb.at[pad_idx].set(0.0)  # padding row zeroed (padding_idx semantics)
    layers = []
    lkeys = jax.random.split(k_layers, cfg["n_layers"])
    for lk in lkeys:
        k1, k2, k3 = jax.random.split(lk, 3)
        layer = {
            "self_attn": init_attn(k1, d, cfg["n_head"], cfg["d_k"], cfg["d_v"]),
            "ffn": init_ffn(k3, d, cfg["d_ffn"]),
        }
        if is_decoder:
            layer["cross_attn"] = init_attn(k2, d, cfg["n_head"], cfg["d_k"], cfg["d_v"])
        layers.append(layer)
    return {
        "emb": emb,
        "pe": positional_encoding_table(cfg["max_len"], d),
        "ln_g": jnp.ones((d,), jnp.float32),
        "ln_b": jnp.zeros((d,), jnp.float32),
        "layers": layers,
    }


def init_transformer(key, cfg):
    k_enc, k_dec, k_proj = jax.random.split(key, 3)
    return {
        "encoder": init_stack(k_enc, cfg, cfg["src_vocab"], cfg["src_pad"], False),
        "decoder": init_stack(k_dec, cfg, cfg["trg_vocab"], cfg["trg_pad"], True),
        "trg_proj_w": xavier(k_proj, (cfg["d_model"], cfg["trg_vocab"])),
    }


# -----------------------------------------------------------------------------
if __name__ == "__main__":
    cfg = dict(
        src_vocab=16, trg_vocab=16,
        src_pad=0, trg_pad=0,
        d_model=32, d_ffn=64,
        n_layers=2, n_head=4, d_k=8, d_v=8,
        max_len=16,
    )

    key = jax.random.PRNGKey(0)
    k_params, k_src, k_trg = jax.random.split(key, 3)
    params = init_transformer(k_params, cfg)

    B, Ls, Lt = 2, 8, 8
    src_seq = jax.random.randint(k_src, (B, Ls), 1, cfg["src_vocab"], dtype=jnp.int32)
    trg_seq = jax.random.randint(k_trg, (B, Lt), 1, cfg["trg_vocab"], dtype=jnp.int32)
    # introduce some padding tokens
    src_seq = src_seq.at[:, -1].set(cfg["src_pad"])
    trg_seq = trg_seq.at[:, -1].set(cfg["trg_pad"])

    logits = transformer_forward(params, cfg, src_seq, trg_seq)
    logits = jax.block_until_ready(logits)

    assert logits.shape == (B * Lt, cfg["trg_vocab"]), logits.shape
    assert bool(jnp.all(jnp.isfinite(logits)))
    print("KERNEL_OK")
</pallas_src>

<mosaic_0001>
module attributes {stable_mosaic.version = 11 : i64} {
  func.func @_layernorm_kernel(%arg0: i32, %arg1: memref<16x32xf32, #tpu.memory_space<vmem>>, %arg2: memref<1x32xf32, #tpu.memory_space<vmem>>, %arg3: memref<1x32xf32, #tpu.memory_space<vmem>>, %arg4: memref<16x32xf32, #tpu.memory_space<vmem>>) attributes {dimension_semantics = [#tpu.dimension_semantics<parallel>], iteration_bounds = array<i64: 1>, scalar_prefetch = 0 : i64, scratch_operands = 0 : i64, tpu.core_type = #tpu.core_type<tc>, window_params = [{transform_indices = @transform_0, window_bounds = array<i64: 16, 32>}, {pipeline_mode = #tpu.pipeline_mode<synchronous>, transform_indices = @transform_1, window_bounds = array<i64: 1, 32>}, {pipeline_mode = #tpu.pipeline_mode<synchronous>, transform_indices = @transform_2, window_bounds = array<i64: 1, 32>}, {transform_indices = @transform_3, window_bounds = array<i64: 16, 32>}]} {
    %c0 = arith.constant 0 : index
    %c0_0 = arith.constant 0 : index
    %0 = vector.load %arg1[%c0, %c0_0] : memref<16x32xf32, #tpu.memory_space<vmem>>, vector<16x32xf32>
    %cst = arith.constant dense<0.000000e+00> : vector<16xf32>
    %1 = vector.multi_reduction <add>, %0, %cst [1] : vector<16x32xf32> to vector<16xf32>
    %2 = vector.shape_cast %1 : vector<16xf32> to vector<16x1xf32>
    %cst_1 = arith.constant 3.200000e+01 : f32
    %3 = vector.broadcast %cst_1 : f32 to vector<16x1xf32>
    %4 = arith.divf %2, %3 : vector<16x1xf32>
    %5 = vector.broadcast %4 : vector<16x1xf32> to vector<16x32xf32>
    %6 = arith.subf %0, %5 : vector<16x32xf32>
    %7 = arith.mulf %6, %6 : vector<16x32xf32>
    %cst_2 = arith.constant dense<0.000000e+00> : vector<16xf32>
    %8 = vector.multi_reduction <add>, %7, %cst_2 [1] : vector<16x32xf32> to vector<16xf32>
    %9 = vector.shape_cast %8 : vector<16xf32> to vector<16x1xf32>
    %cst_3 = arith.constant 3.200000e+01 : f32
    %10 = vector.broadcast %cst_3 : f32 to vector<16x1xf32>
    %11 = arith.divf %9, %10 : vector<16x1xf32>
    %cst_4 = arith.constant 9.99999997E-7 : f32
    %12 = vector.broadcast %cst_4 : f32 to vector<16x1xf32>
    %13 = arith.addf %11, %12 : vector<16x1xf32>
    %14 = math.rsqrt %13 : vector<16x1xf32>
    %15 = vector.broadcast %4 : vector<16x1xf32> to vector<16x32xf32>
    %16 = arith.subf %0, %15 : vector<16x32xf32>
    %17 = vector.broadcast %14 : vector<16x1xf32> to vector<16x32xf32>
    %18 = arith.mulf %16, %17 : vector<16x32xf32>
    %c0_5 = arith.constant 0 : index
    %c0_6 = arith.constant 0 : index
    %19 = vector.load %arg2[%c0_5, %c0_6] : memref<1x32xf32, #tpu.memory_space<vmem>>, vector<1x32xf32>
    %20 = vector.broadcast %19 : vector<1x32xf32> to vector<16x32xf32>
    %21 = arith.mulf %18, %20 : vector<16x32xf32>
    %c0_7 = arith.constant 0 : index
    %c0_8 = arith.constant 0 : index
    %22 = vector.load %arg3[%c0_7, %c0_8] : memref<1x32xf32, #tpu.memory_space<vmem>>, vector<1x32xf32>
    %23 = vector.broadcast %22 : vector<1x32xf32> to vector<16x32xf32>
    %24 = arith.addf %21, %23 : vector<16x32xf32>
    %c0_9 = arith.constant 0 : index
    %c0_10 = arith.constant 0 : index
    %25 = vector.load %arg4[%c0_9, %c0_10] : memref<16x32xf32, #tpu.memory_space<vmem>>, vector<16x32xf32>
    tpu.vector_store %arg4[%c0_9, %c0_10], %24 {strides = array<i32>} : memref<16x32xf32, #tpu.memory_space<vmem>>, vector<16x32xf32>,
    return
  }
  func.func @transform_0(%arg0: i32) -> (i32, i32) {
    %c0_i32 = arith.constant 0 : i32
    %c0_i32_0 = arith.constant 0 : i32
    return %arg0, %c0_i32 : i32, i32
  }
  func.func @transform_1(%arg0: i32) -> (i32, i32) {
    %c0_i32 = arith.constant 0 : i32
    %c0_i32_0 = arith.constant 0 : i32
    %c0_i32_1 = arith.constant 0 : i32
    return %c0_i32, %c0_i32_0 : i32, i32
  }
  func.func @transform_2(%arg0: i32) -> (i32, i32) {
    %c0_i32 = arith.constant 0 : i32
    %c0_i32_0 = arith.constant 0 : i32
    %c0_i32_1 = arith.constant 0 : i32
    return %c0_i32, %c0_i32_0 : i32, i32
  }
  func.func @transform_3(%arg0: i32) -> (i32, i32) {
    %c0_i32 = arith.constant 0 : i32
    %c0_i32_0 = arith.constant 0 : i32
    return %arg0, %c0_i32 : i32, i32
  }
}

</mosaic_0001>

<llo_original>
// kernel: tpu_custom_call.1
$region0: #{tpu_custom_call.1}
  #allocation0 [shape = 'u32[]', space=smem, size = 0x4, offset = 0x4, fixed_abs, tag = 'smem constant byte address 0x4 - core index']
  #allocation1 [shape = 'u32[144,128]{1,0:T(1,128)}', space=vmem, size = 0x12000, scoped, tag = 'internal scratch']
  %s0 = inlined_call_operand.hbm [shape: f32[16,32], index: 0, kind: input, shape index: {}]
  %s1 = inlined_call_operand.vmem [shape: f32[1,32], index: 1, kind: input, shape index: {}]
  %s2 = inlined_call_operand.vmem [shape: f32[1,32], index: 2, kind: input, shape index: {}]
  %s3 = inlined_call_operand.hbm [shape: f32[16,32], index: 3, kind: output, shape index: {}]
  %s4 = sld [smem:[#allocation0]]
  $region26: #{tpu_custom_call.1} parent=0
    _
  %s6 = ssub.s32 1, %s4
  %s7 = scalar_select 0, %s6, %s4
  $region1: #{tpu_custom_call.1} parent=0
    #allocation2 [shape = 'u8[8192]{0}', space=vmem, size = 0x2000, scoped, tag = 'input window, operand 0, single buffered']
    #allocation3 [shape = 's32[1]{0}', space=sflag, size = 0x4, scoped, tag = 'scoped memory for tpu_custom_call.1']
    #allocation4 [shape = 's32[1]{0}', space=sflag, size = 0x4, scoped, tag = 'scoped memory for tpu_custom_call.1']
    #allocation5 [shape = 'u8[8192]{0}', space=vmem, size = 0x2000, scoped, tag = 'output window, operand 0, single buffered']
    %8 = vsyncpa [#allocation3], 0
    %9 = vsyncpa [#allocation4], 0
    // Predicated region
    $region2: #{tpu_custom_call.1} parent=1 // pred_check
      _
    $region3: #{tpu_custom_call.1} parent=1 // pred_check_branch
      %11 = sbr.rel (0) target = $region5
    $region4: #{tpu_custom_call.1} parent=1 // pred_region
      %s13 = ssub.s32 256, 256
      %14 = vsyncadd [#allocation3], %s13
      %s15 = sshll.u32 [#allocation2], 4
      %s16 = int_to_ptr.vmem [resolvable:$true] %s15
      %21 = dma.hbm_to_vmem [thread:$0]  %s0, 256, %s16, [#allocation3], 128, 128, 8
    $region5: #{tpu_custom_call.1} parent=1 // pred_fallthru
      _
    // Predicated region
    $region6: #{tpu_custom_call.1} parent=1 // pred_check
      _
    $region7: #{tpu_custom_call.1} parent=1 // pred_check_branch
      %23 = sbr.rel (0) target = $region9
    $region8: #{tpu_custom_call.1} parent=1 // pred_region
      _
    $region9: #{tpu_custom_call.1} parent=1 // pred_fallthru
      _
    // Predicated region
    $region10: #{tpu_custom_call.1} parent=1 // pred_check
      _
    $region11: #{tpu_custom_call.1} parent=1 // pred_check_branch
      %25 = sbr.rel (0) target = $region13
    $region12: #{tpu_custom_call.1} parent=1 // pred_region
      _
    $region13: #{tpu_custom_call.1} parent=1 // pred_fallthru
      _
    // Predicated region
    $region14: #{tpu_custom_call.1} parent=1 // pred_check
      _
    $region15: #{tpu_custom_call.1} parent=1 // pred_check_branch
      %27 = sbr.rel (0) target = $region17
    $region16: #{tpu_custom_call.1} parent=1 // pred_region
      %28 = dma.done [#allocation3], 256
    $region17: #{tpu_custom_call.1} parent=1 // pred_fallthru
      _
    %v29 = vld [vmem:[#allocation2] sm:$0xff]
    %v30 = vld [vmem:[#allocation2 + $0x8] sm:$0xff]
    %vm31 = vcmask 261120
    %v32 = vsel %vm31, %v29, 0.0
    %33 = vadd.xlane.f32.xlu0 %v32
    %v34 = vpop.xlane.xlu0 %33
    %v35 = vsel %vm31, %v30, 0.0
    %36 = vadd.xlane.f32.xlu0 %v35
    %v37 = vpop.xlane.xlu0 %36
    %v38 = vrcp.pop 32.0
    %v39 = vmul.f32 %v34, %v38
    %v40 = vmul.f32 %v37, %v38
    %v41 = vsub.f32 %v29, %v39
    %v42 = vsub.f32 %v30, %v40
    %v43 = vmul.f32 %v41, %v41
    %v44 = vmul.f32 %v42, %v42
    %v45 = vsel %vm31, %v43, 0.0
    %46 = vadd.xlane.f32.xlu0 %v45
    %v47 = vpop.xlane.xlu0 %46
    %v48 = vsel %vm31, %v44, 0.0
    %49 = vadd.xlane.f32.xlu0 %v48
    %v50 = vpop.xlane.xlu0 %49
    %v51 = vmul.f32 %v47, %v38
    %v52 = vmul.f32 %v50, %v38
    %v53 = vadd.f32 %v51, 1e-06
    %v54 = vadd.f32 %v52, 1e-06
    %v55 = vrsqrt.pop %v53
    %v56 = vrsqrt.pop %v54
    %v57 = vmul.f32 %v41, %v55
    %v58 = vmul.f32 %v42, %v56
    %v59 = vld [vmem:[%s1] sm:$0x1]
    %v61 = vlaneseq
    %v62 = vshrl.u32 %v61, 7
    %v63 = vsub.s32 0, %v62
    %v64 = vrot.slane %v59, %v63
    %v66 = vmul.f32 %v57, %v64
    %v67 = vmul.f32 %v58, %v64
    %v68 = vld [vmem:[%s2] sm:$0x1]
    %v70 = vlaneseq
    %v71 = vshrl.u32 %v70, 7
    %v72 = vsub.s32 0, %v71
    %v73 = vrot.slane %v68, %v72
    %v75 = vadd.f32 %v66, %v73
    %v76 = vadd.f32 %v67, %v73
    %77 = vst.msk [vmem:[#allocation5] sm:$0xff] %vm31, %v75
    %78 = vst.msk [vmem:[#allocation5 + $0x8] sm:$0xff] %vm31, %v76
    // Predicated region
    $region18: #{tpu_custom_call.1} parent=1 // pred_check
      _
    $region19: #{tpu_custom_call.1} parent=1 // pred_check_branch
      %80 = sbr.rel (0) target = $region21
    $region20: #{tpu_custom_call.1} parent=1 // pred_region
      %s82 = ssub.s32 256, 256
      %83 = vsyncadd [#allocation4], %s82
      %s84 = sshll.u32 [#allocation5], 4
      %s85 = int_to_ptr.vmem [resolvable:$true] %s84
      %90 = dma.vmem_to_hbm [thread:$0]  %s85, 256, %s3, [#allocation4], 128, 128, 8
    $region21: #{tpu_custom_call.1} parent=1 // pred_fallthru
      _
    // Predicated region
    $region22: #{tpu_custom_call.1} parent=1 // pred_check
      _
    $region23: #{tpu_custom_call.1} parent=1 // pred_check_branch
      %92 = sbr.rel (0) target = $region25
    $region24: #{tpu_custom_call.1} parent=1 // pred_region
      %93 = dma.done [#allocation4], 256
    $region25: #{tpu_custom_call.1} parent=1 // pred_fallthru
      _
    %94 = vsyncpa [#allocation3], 1
    %95 = vsyncpa [#allocation4], 1

</llo_original>
